<compile_context>
chip_gen: v7x
topology: tpu7x:2x2x1
jax: 0.10.0
libtpu: 0.0.40
codegen_flags: <defaults>
</compile_context>

<pallas_src>
import jax
import jax.numpy as jnp
from jax.experimental import pallas as pl
from jax.experimental.pallas import tpu as pltpu

INPUT_DIM = 2
HIDDEN_DIM = 2
OUTPUT_DIM = 1
# packed layout: [w1 row-major (2x2)] [b1 (2)] [w2 (2x1)] [b2 (1)] -> 9 scalars
NUM_PARAMS = INPUT_DIM * HIDDEN_DIM + HIDDEN_DIM + HIDDEN_DIM * OUTPUT_DIM + OUTPUT_DIM

LANES = 128            # vreg lane width; batch fast axis
MAX_BLOCK_ROWS = 2048  # (2,2048,128) f32 in-block = 2 MiB + 1 MiB out; double-buffered ~6 MiB


def _sigmoid_eup(z):
    # sigmoid(z) == 0.5 * tanh(0.5 z) + 0.5 ; keeps the transcendental on the EUP slot
    # instead of lowering a divide onto the VALU.
    return 0.5 * jnp.tanh(0.5 * z) + 0.5


def mlp_kernel(p_ref, x_ref, o_ref):
    # p_ref : SMEM f32[9]             (scalar-prefetched packed params)
    # x_ref : VMEM (INPUT_DIM, S, 128) batch packed over sublanes x lanes
    # o_ref : VMEM (S, 128)
    x0 = x_ref[0].astype(jnp.float32)            # (S, 128) feature 0 across batch
    x1 = x_ref[1].astype(jnp.float32)            # (S, 128) feature 1 across batch

    # Hidden layer: h_j = sigmoid(x0*W1[0,j] + x1*W1[1,j] + b1[j])  (VALU + EUP only)
    h0 = _sigmoid_eup(x0 * p_ref[0] + x1 * p_ref[2] + p_ref[4])
    h1 = _sigmoid_eup(x0 * p_ref[1] + x1 * p_ref[3] + p_ref[5])

    # Output layer: y = sigmoid(h0*W2[0,0] + h1*W2[1,0] + b2[0])
    y = _sigmoid_eup(h0 * p_ref[6] + h1 * p_ref[7] + p_ref[8])

    o_ref[...] = y.astype(o_ref.dtype)           # dense, unmasked (S,128) store


def pack_params(w1, b1, w2, b2):
    """Pack once per model (hoisted out of the per-call path)."""
    return jnp.concatenate(
        [w1.reshape(-1), b1.reshape(-1), w2.reshape(-1), b2.reshape(-1)]
    ).astype(jnp.float32)


def _choose_block_rows(rows):
    # rows = ceil(B / 128) batch rows.  Pick S sublane rows per block:
    #  * multiple of 16 so bf16 I/O stays tile-aligned (16 is also a multiple of 8 for f32),
    #  * aim for >= 2 grid steps so v7x megacore has work to split,
    #  * cap at ~3 MiB/step so double buffers fit v5e's 16 MiB scoped VMEM.
    target = max(16, -(-rows // 2))
    s = min(MAX_BLOCK_ROWS, target)
    return ((s + 15) // 16) * 16


@jax.jit
def neural_net_forward_packed(params, x):
    """x: (B, INPUT_DIM); params: packed f32[9].  Returns (B, OUTPUT_DIM) in x.dtype.

    Weights are stored pre-transposed (in, out) relative to torch's (out, in), so
    the math is y = sigmoid(sigmoid(x @ w1 + b1) @ w2 + b2), identical to
    nn.Linear -> Sigmoid -> nn.Linear -> Sigmoid.
    """
    B = x.shape[0]
    io_dtype = x.dtype
    rows = pl.cdiv(B, LANES)
    S = _choose_block_rows(rows)
    n_tiles = pl.cdiv(rows, S)
    rows_p = n_tiles * S
    Bp = rows_p * LANES

    # Feature-major layout with batch packed over (sublanes, lanes).  Under jit the
    # transpose/pad/reshape fuse into one relayout pass feeding the kernel.
    # TODO(synk): carry activations feature-major upstream (or de-interleave lanes
    # in-kernel via pltpu.roll) to remove this one extra HBM pass entirely.
    xT = jnp.pad(x.T, ((0, 0), (0, Bp - B)))          # (INPUT_DIM, Bp)
    x_packed = xT.reshape(INPUT_DIM, rows_p, LANES)   # (INPUT_DIM, rows_p, 128)

    out = pl.pallas_call(
        mlp_kernel,
        out_shape=jax.ShapeDtypeStruct((rows_p, LANES), io_dtype),
        grid_spec=pltpu.PrefetchScalarGridSpec(
            num_scalar_prefetch=1,                    # packed params -> SMEM, passed first
            grid=(n_tiles,),
            in_specs=[pl.BlockSpec((INPUT_DIM, S, LANES), lambda i, p: (0, i, 0))],
            out_specs=pl.BlockSpec((S, LANES), lambda i, p: (i, 0)),
        ),
        compiler_params=pltpu.CompilerParams(
            dimension_semantics=("parallel",),        # megacore sharding on v7x; free elsewhere
        ),
    )(params, x_packed)

    return out.reshape(Bp)[:B].reshape(B, OUTPUT_DIM)


def neural_net_forward(x, w1, b1, w2, b2):
    # Note: for very small batches a plain fused-jnp forward is cheaper than
    # padding + a kernel launch; kept on the Pallas path here so the kernel is
    # always exercised.
    return neural_net_forward_packed(pack_params(w1, b1, w2, b2), x)


def init_params(key):
    # Mimic torch.nn.Linear default init: U(-1/sqrt(fan_in), 1/sqrt(fan_in)).
    k1, k2, k3, k4 = jax.random.split(key, 4)
    bound1 = 1.0 / jnp.sqrt(INPUT_DIM)
    bound2 = 1.0 / jnp.sqrt(HIDDEN_DIM)
    w1 = jax.random.uniform(k1, (INPUT_DIM, HIDDEN_DIM), jnp.float32, -bound1, bound1)
    b1 = jax.random.uniform(k2, (HIDDEN_DIM,), jnp.float32, -bound1, bound1)
    w2 = jax.random.uniform(k3, (HIDDEN_DIM, OUTPUT_DIM), jnp.float32, -bound2, bound2)
    b2 = jax.random.uniform(k4, (OUTPUT_DIM,), jnp.float32, -bound2, bound2)
    return w1, b1, w2, b2


if __name__ == "__main__":
    key = jax.random.PRNGKey(0)
    key_x, key_p = jax.random.split(key)

    batch = 8
    x = jax.random.normal(key_x, (batch, INPUT_DIM), jnp.float32)
    w1, b1, w2, b2 = init_params(key_p)
    params = pack_params(w1, b1, w2, b2)

    # Pure-JAX reference of the same forward pass.
    ref = jax.nn.sigmoid(jax.nn.sigmoid(x @ w1 + b1[None, :]) @ w2 + b2[None, :])

    # f32 I/O (all generations).
    out = jax.block_until_ready(neural_net_forward_packed(params, x))
    assert out.shape == (batch, OUTPUT_DIM)
    assert jnp.allclose(out, ref, atol=1e-5), "f32 mismatch vs reference"

    # bf16 I/O (HBM-traffic-halving path for v6e/v7x); math stays f32 in-kernel.
    out_bf16 = jax.block_until_ready(
        neural_net_forward_packed(params, x.astype(jnp.bfloat16))
    )
    assert out_bf16.shape == (batch, OUTPUT_DIM)
    assert jnp.allclose(out_bf16.astype(jnp.float32), ref, atol=2e-2), "bf16 mismatch"

    # Batch that is not a multiple of 128 (exercises pad + slice correctness).
    batch2 = 300
    x2 = jax.random.normal(key_x, (batch2, INPUT_DIM), jnp.float32)
    ref2 = jax.nn.sigmoid(jax.nn.sigmoid(x2 @ w1 + b1[None, :]) @ w2 + b2[None, :])
    out2 = jax.block_until_ready(neural_net_forward_packed(params, x2))
    assert out2.shape == (batch2, OUTPUT_DIM)
    assert jnp.allclose(out2, ref2, atol=1e-5), "f32 (B=300) mismatch vs reference"

    print("KERNEL_OK")
</pallas_src>

<mosaic_0001>
module attributes {stable_mosaic.version = 11 : i64} {
  func.func @mlp_kernel(%arg0: i32, %arg1: memref<9xf32, #tpu.memory_space<smem>>, %arg2: memref<2x16x128xf32, #tpu.memory_space<vmem>>, %arg3: memref<16x128xf32, #tpu.memory_space<vmem>>) attributes {dimension_semantics = [#tpu.dimension_semantics<parallel>], iteration_bounds = array<i64: 1>, scalar_prefetch = 1 : i64, scratch_operands = 0 : i64, tpu.core_type = #tpu.core_type<tc>, window_params = [{transform_indices = @transform_0, window_bounds = array<i64: 2, 16, 128>}, {transform_indices = @transform_1, window_bounds = array<i64: 16, 128>}]} {
    %c0 = arith.constant 0 : index
    %c0_0 = arith.constant 0 : index
    %c0_1 = arith.constant 0 : index
    %0 = vector.load %arg2[%c0, %c0_0, %c0_1] : memref<2x16x128xf32, #tpu.memory_space<vmem>>, vector<1x16x128xf32>
    %1 = vector.shape_cast %0 : vector<1x16x128xf32> to vector<16x128xf32>
    %c1 = arith.constant 1 : index
    %c0_2 = arith.constant 0 : index
    %c0_3 = arith.constant 0 : index
    %2 = vector.load %arg2[%c1, %c0_2, %c0_3] : memref<2x16x128xf32, #tpu.memory_space<vmem>>, vector<1x16x128xf32>
    %3 = vector.shape_cast %2 : vector<1x16x128xf32> to vector<16x128xf32>
    %c0_4 = arith.constant 0 : index
    %4 = memref.load %arg1[%c0_4] : memref<9xf32, #tpu.memory_space<smem>>
    %5 = vector.broadcast %4 : f32 to vector<16x128xf32>
    %6 = arith.mulf %1, %5 : vector<16x128xf32>
    %c2 = arith.constant 2 : index
    %7 = memref.load %arg1[%c2] : memref<9xf32, #tpu.memory_space<smem>>
    %8 = vector.broadcast %7 : f32 to vector<16x128xf32>
    %9 = arith.mulf %3, %8 : vector<16x128xf32>
    %10 = arith.addf %6, %9 : vector<16x128xf32>
    %c4 = arith.constant 4 : index
    %11 = memref.load %arg1[%c4] : memref<9xf32, #tpu.memory_space<smem>>
    %12 = vector.broadcast %11 : f32 to vector<16x128xf32>
    %13 = arith.addf %10, %12 : vector<16x128xf32>
    %cst = arith.constant 5.000000e-01 : f32
    %14 = vector.broadcast %cst : f32 to vector<16x128xf32>
    %15 = arith.mulf %14, %13 : vector<16x128xf32>
    %16 = math.tanh %15 : vector<16x128xf32>
    %cst_5 = arith.constant 5.000000e-01 : f32
    %17 = vector.broadcast %cst_5 : f32 to vector<16x128xf32>
    %18 = arith.mulf %17, %16 : vector<16x128xf32>
    %cst_6 = arith.constant 5.000000e-01 : f32
    %19 = vector.broadcast %cst_6 : f32 to vector<16x128xf32>
    %20 = arith.addf %18, %19 : vector<16x128xf32>
    %c1_7 = arith.constant 1 : index
    %21 = memref.load %arg1[%c1_7] : memref<9xf32, #tpu.memory_space<smem>>
    %22 = vector.broadcast %21 : f32 to vector<16x128xf32>
    %23 = arith.mulf %1, %22 : vector<16x128xf32>
    %c3 = arith.constant 3 : index
    %24 = memref.load %arg1[%c3] : memref<9xf32, #tpu.memory_space<smem>>
    %25 = vector.broadcast %24 : f32 to vector<16x128xf32>
    %26 = arith.mulf %3, %25 : vector<16x128xf32>
    %27 = arith.addf %23, %26 : vector<16x128xf32>
    %c5 = arith.constant 5 : index
    %28 = memref.load %arg1[%c5] : memref<9xf32, #tpu.memory_space<smem>>
    %29 = vector.broadcast %28 : f32 to vector<16x128xf32>
    %30 = arith.addf %27, %29 : vector<16x128xf32>
    %cst_8 = arith.constant 5.000000e-01 : f32
    %31 = vector.broadcast %cst_8 : f32 to vector<16x128xf32>
    %32 = arith.mulf %31, %30 : vector<16x128xf32>
    %33 = math.tanh %32 : vector<16x128xf32>
    %cst_9 = arith.constant 5.000000e-01 : f32
    %34 = vector.broadcast %cst_9 : f32 to vector<16x128xf32>
    %35 = arith.mulf %34, %33 : vector<16x128xf32>
    %cst_10 = arith.constant 5.000000e-01 : f32
    %36 = vector.broadcast %cst_10 : f32 to vector<16x128xf32>
    %37 = arith.addf %35, %36 : vector<16x128xf32>
    %c6 = arith.constant 6 : index
    %38 = memref.load %arg1[%c6] : memref<9xf32, #tpu.memory_space<smem>>
    %39 = vector.broadcast %38 : f32 to vector<16x128xf32>
    %40 = arith.mulf %20, %39 : vector<16x128xf32>
    %c7 = arith.constant 7 : index
    %41 = memref.load %arg1[%c7] : memref<9xf32, #tpu.memory_space<smem>>
    %42 = vector.broadcast %41 : f32 to vector<16x128xf32>
    %43 = arith.mulf %37, %42 : vector<16x128xf32>
    %44 = arith.addf %40, %43 : vector<16x128xf32>
    %c8 = arith.constant 8 : index
    %45 = memref.load %arg1[%c8] : memref<9xf32, #tpu.memory_space<smem>>
    %46 = vector.broadcast %45 : f32 to vector<16x128xf32>
    %47 = arith.addf %44, %46 : vector<16x128xf32>
    %cst_11 = arith.constant 5.000000e-01 : f32
    %48 = vector.broadcast %cst_11 : f32 to vector<16x128xf32>
    %49 = arith.mulf %48, %47 : vector<16x128xf32>
    %50 = math.tanh %49 : vector<16x128xf32>
    %cst_12 = arith.constant 5.000000e-01 : f32
    %51 = vector.broadcast %cst_12 : f32 to vector<16x128xf32>
    %52 = arith.mulf %51, %50 : vector<16x128xf32>
    %cst_13 = arith.constant 5.000000e-01 : f32
    %53 = vector.broadcast %cst_13 : f32 to vector<16x128xf32>
    %54 = arith.addf %52, %53 : vector<16x128xf32>
    %c0_14 = arith.constant 0 : index
    %c0_15 = arith.constant 0 : index
    %55 = vector.load %arg3[%c0_14, %c0_15] : memref<16x128xf32, #tpu.memory_space<vmem>>, vector<16x128xf32>
    tpu.vector_store %arg3[%c0_14, %c0_15], %54 {strides = array<i32>} : memref<16x128xf32, #tpu.memory_space<vmem>>, vector<16x128xf32>,
    return
  }
  func.func @transform_0(%arg0: i32, %arg1: memref<9xf32, #tpu.memory_space<smem>>) -> (i32, i32, i32) {
    %c0_i32 = arith.constant 0 : i32
    %c0_i32_0 = arith.constant 0 : i32
    %c0_i32_1 = arith.constant 0 : i32
    return %c0_i32, %arg0, %c0_i32_0 : i32, i32, i32
  }
  func.func @transform_1(%arg0: i32, %arg1: memref<9xf32, #tpu.memory_space<smem>>) -> (i32, i32) {
    %c0_i32 = arith.constant 0 : i32
    %c0_i32_0 = arith.constant 0 : i32
    return %arg0, %c0_i32 : i32, i32
  }
}

</mosaic_0001>

<llo_original>
// kernel: neural_net_forward_packed.1
$region0: #{neural_net_forward_packed.1}
  #allocation0 [shape = 'u32[]', space=smem, size = 0x4, offset = 0x4, fixed_abs, tag = 'smem constant byte address 0x4 - core index']
  #allocation1 [shape = 'u32[144,128]{1,0:T(1,128)}', space=vmem, size = 0x12000, scoped, tag = 'internal scratch']
  #allocation2 [shape = 's32[1]{0}', space=sflag, size = 0x4, scoped, tag = 'scoped memory for neural_net_forward_packed.1']
  #allocation3 [shape = 'u8[512]{0}', space=smem, size = 0x200, scoped, tag = 'prefetched SMEM operand 0']
  %s0 = inlined_call_operand.vmem [shape: f32[9], index: 0, kind: input, shape index: {}]
  %s1 = inlined_call_operand.vmem [shape: f32[2,16,128], index: 1, kind: input, shape index: {}]
  %s2 = inlined_call_operand.vmem [shape: f32[16,128], index: 2, kind: output, shape index: {}]
  %s3 = sld [smem:[#allocation0]]
  $region14: #{neural_net_forward_packed.1} parent=0
    _
  %s5 = ssub.s32 1, %s3
  %s6 = scalar_select 0, %s5, %s3
  %s7 = sshll.u32 %s0, 4
  %s8 = int_to_ptr.vmem [resolvable:$true] %s7
  %10 = dma.vmem_to_smem %s8, 16, [#allocation3], [#allocation2]
  %11 = dma.done [#allocation2], 16
  %12 = sfence
  // Predicated region
  $region2: #{neural_net_forward_packed.1} parent=0 // pred_check
    _
  $region3: #{neural_net_forward_packed.1} parent=0 // pred_check_branch
    %14 = sbr.rel (0) target = $region5
  $region4: #{neural_net_forward_packed.1} parent=0 // pred_region
    _
  $region5: #{neural_net_forward_packed.1} parent=0 // pred_fallthru
    _
  %v15 = vld [vmem:[%s1] sm:$0xff]
  %v16 = vld [vmem:[%s1 + $0x8] sm:$0xff]
  %s17 = scalar_lea.vmem %s1, 16
  %v18 = vld [vmem:[%s17] sm:$0xff]
  %v19 = vld [vmem:[%s17 + $0x8] sm:$0xff]
  %s20 = sld [smem:[#allocation3]]
  %v21 = vstv %s20
  %v22 = vmul.f32 %v15, %v21
  %v23 = vmul.f32 %v16, %v21
  %s24 = sld [smem:[#allocation3 + $0x2]]
  %v25 = vstv %s24
  %v26 = vmul.f32 %v18, %v25
  %v27 = vmul.f32 %v19, %v25
  %v28 = vadd.f32 %v22, %v26
  %v29 = vadd.f32 %v23, %v27
  %s30 = sld [smem:[#allocation3 + $0x4]]
  %v31 = vstv %s30
  %v32 = vadd.f32 %v28, %v31
  %v33 = vadd.f32 %v29, %v31
  %v34 = vmul.f32 %v32, 0.5
  %v35 = vmul.f32 %v33, 0.5
  %v36 = vtanh.pop %v34
  %v37 = vtanh.pop %v35
  %v38 = vmul.f32 %v36, 0.5
  %v39 = vmul.f32 %v37, 0.5
  %v40 = vadd.f32 %v38, 0.5
  %v41 = vadd.f32 %v39, 0.5
  %s42 = sld [smem:[#allocation3 + $0x1]]
  %v43 = vstv %s42
  %v44 = vmul.f32 %v15, %v43
  %v45 = vmul.f32 %v16, %v43
  %s46 = sld [smem:[#allocation3 + $0x3]]
  %v47 = vstv %s46
  %v48 = vmul.f32 %v18, %v47
  %v49 = vmul.f32 %v19, %v47
  %v50 = vadd.f32 %v44, %v48
  %v51 = vadd.f32 %v45, %v49
  %s52 = sld [smem:[#allocation3 + $0x5]]
  %v53 = vstv %s52
  %v54 = vadd.f32 %v50, %v53
  %v55 = vadd.f32 %v51, %v53
  %v56 = vmul.f32 %v54, 0.5
  %v57 = vmul.f32 %v55, 0.5
  %v58 = vtanh.pop %v56
  %v59 = vtanh.pop %v57
  %v60 = vmul.f32 %v58, 0.5
  %v61 = vmul.f32 %v59, 0.5
  %v62 = vadd.f32 %v60, 0.5
  %v63 = vadd.f32 %v61, 0.5
  %s64 = sld [smem:[#allocation3 + $0x6]]
  %v65 = vstv %s64
  %v66 = vmul.f32 %v40, %v65
  %v67 = vmul.f32 %v41, %v65
  %s68 = sld [smem:[#allocation3 + $0x7]]
  %v69 = vstv %s68
  %v70 = vmul.f32 %v62, %v69
  %v71 = vmul.f32 %v63, %v69
  %v72 = vadd.f32 %v66, %v70
  %v73 = vadd.f32 %v67, %v71
  %s74 = sld [smem:[#allocation3 + $0x8]]
  %v75 = vstv %s74
  %v76 = vadd.f32 %v72, %v75
  %v77 = vadd.f32 %v73, %v75
  %v78 = vmul.f32 %v76, 0.5
  %v79 = vmul.f32 %v77, 0.5
  %v80 = vtanh.pop %v78
  %v81 = vtanh.pop %v79
  %v82 = vmul.f32 %v80, 0.5
  %v83 = vmul.f32 %v81, 0.5
  %v84 = vadd.f32 %v82, 0.5
  %v85 = vadd.f32 %v83, 0.5
  %86 = vst [vmem:[%s2] sm:$0xff] %v84
  %87 = vst [vmem:[%s2 + $0x8] sm:$0xff] %v85
  // Predicated region
  $region6: #{neural_net_forward_packed.1} parent=0 // pred_check
    _
  $region7: #{neural_net_forward_packed.1} parent=0 // pred_check_branch
    %89 = sbr.rel (0) target = $region9
  $region8: #{neural_net_forward_packed.1} parent=0 // pred_region
    _
  $region9: #{neural_net_forward_packed.1} parent=0 // pred_fallthru
    _
  // Predicated region
  $region10: #{neural_net_forward_packed.1} parent=0 // pred_check
    _
  $region11: #{neural_net_forward_packed.1} parent=0 // pred_check_branch
    %91 = sbr.rel (0) target = $region13
  $region12: #{neural_net_forward_packed.1} parent=0 // pred_region
    _
  $region13: #{neural_net_forward_packed.1} parent=0 // pred_fallthru
    _

</llo_original>
